<compile_context>
chip_gen: v7x
topology: tpu7x:2x2x1
jax: 0.10.0
libtpu: 0.0.40
codegen_flags: <defaults>
</compile_context>

<pallas_src>
import functools

import jax
import jax.numpy as jnp
from jax.experimental import pallas as pl
from jax.experimental.pallas import tpu as pltpu

LAMBDA_COLOR = 10.0
N_EIGENVECTORS = 5
FEAT_DIM = 32
PATCH = 16


# ----------------------------------------------------------------------------
# Pallas kernel: row tile of  L = diag(rowsum(S)) - S
# ----------------------------------------------------------------------------
def _dsm_laplacian_kernel(a_ref, at_ref, wcol_ref, l_ref, *, lambda_color, tm):
    i = pl.program_id(0)
    n_cols = l_ref.shape[1]

    # (TM, D) x (D, Npad) -> (TM, Npad); f32 operands, f32 MXU accumulation.
    fsim = jnp.dot(a_ref[...], at_ref[...], preferred_element_type=jnp.float32)
    fsim = jnp.maximum(fsim, 0.0)                                     # ReLU
    sim = fsim + lambda_color * wcol_ref[...].astype(jnp.float32)     # fuse color

    deg = jnp.sum(sim, axis=1, keepdims=True)                         # (TM, 1)

    # L = diag(deg) - S with one full-width, lane-dense store (no read-modify-
    # write of the diagonal block).  The select runs on the VPU, which has
    # enormous slack in this HBM-bound kernel.
    rows = i * tm + jax.lax.broadcasted_iota(jnp.int32, (tm, n_cols), 0)
    cols = jax.lax.broadcasted_iota(jnp.int32, (tm, n_cols), 1)
    l_ref[...] = jnp.where(rows == cols, deg - sim, -sim).astype(l_ref.dtype)


def _choose_tiling(n, d):
    """Pick (tm, n_pad, vmem_limit) from the local TPU generation's VMEM."""
    try:
        vmem_cap = int(pltpu.get_tpu_info().vmem_capacity_bytes)
    except Exception:
        vmem_cap = 64 * 1024 * 1024          # conservative default (v7x per-TC)
    # Leave ~25% headroom for Mosaic internals; never ask for more than 96 MiB.
    vmem_budget = min(vmem_cap * 3 // 4, 96 * 1024 * 1024)

    n128 = 128 * pl.cdiv(n, 128)
    tm = 128
    for cand in (512, 256, 128):
        n_pad_c = cand * pl.cdiv(n, cand)
        need = (4 * d * n_pad_c               # A^T f32, grid-invariant
                + 2 * 4 * cand * d            # A row tile f32, double-buffered
                + 2 * 2 * cand * n_pad_c      # W_color slab bf16, double-buffered
                + 2 * 4 * cand * n_pad_c)     # L slab f32, double-buffered
        if need <= vmem_budget:
            tm = cand
            break
    tm = min(tm, n128)                        # small problems -> one grid step
    n_pad = tm * pl.cdiv(n, tm)
    return tm, n_pad, int(vmem_budget)


def dsm_laplacian(attn_feats, color_aff, lambda_color=LAMBDA_COLOR,
                  out_dtype=jnp.float32):
    """L = diag(rowsum(S)) - S with S = relu(cos_sim(A)) + lambda * W_color."""
    N, D = attn_feats.shape
    tm, n_pad, vmem_budget = _choose_tiling(N, D)
    pad = n_pad - N

    # Hoisted normalization (done once, not per grid step): rsqrt + eps avoids
    # NaNs for zero-norm rows (PyTorch cosine_similarity-style epsilon).
    a = attn_feats.astype(jnp.float32)
    a_hat = a * jax.lax.rsqrt(jnp.sum(a * a, axis=1, keepdims=True) + 1e-12)
    a_hat = jnp.pad(a_hat, ((0, pad), (0, 0)))                     # (Npad, D)
    a_hat_t = a_hat.T                                              # (D, Npad)
    wcol_bf = jnp.pad(color_aff, ((0, pad), (0, pad))).astype(jnp.bfloat16)

    kernel = functools.partial(_dsm_laplacian_kernel,
                               lambda_color=float(lambda_color), tm=tm)
    l_pad = pl.pallas_call(
        kernel,
        out_shape=jax.ShapeDtypeStruct((n_pad, n_pad), out_dtype),
        grid=(n_pad // tm,),
        in_specs=[
            pl.BlockSpec((tm, D), lambda i: (i, 0)),        # a_hat row tile
            pl.BlockSpec((D, n_pad), lambda i: (0, 0)),     # a_hat^T (resident)
            pl.BlockSpec((tm, n_pad), lambda i: (i, 0)),    # W_color row slab
        ],
        out_specs=pl.BlockSpec((tm, n_pad), lambda i: (i, 0)),
        compiler_params=pltpu.CompilerParams(
            dimension_semantics=("parallel",),   # shards row tiles on v7x 2-TC
            vmem_limit_bytes=vmem_budget,
        ),
    )(a_hat, a_hat_t, wcol_bf)
    return l_pad[:N, :N]


# ----------------------------------------------------------------------------
# Glue (plain JAX)
# ----------------------------------------------------------------------------
def bilinear_resize_chw(x, out_h, out_w):
    """F.interpolate(mode='bilinear', align_corners=False) on a (C, H, W) array."""
    C, H, W = x.shape

    def src_idx(in_size, out_size):
        o = jnp.arange(out_size, dtype=jnp.float32)
        src = (o + 0.5) * (in_size / out_size) - 0.5
        src = jnp.maximum(src, 0.0)
        i0 = jnp.minimum(jnp.floor(src).astype(jnp.int32), in_size - 1)
        i1 = jnp.minimum(i0 + 1, in_size - 1)
        w1 = src - i0.astype(jnp.float32)
        return i0, i1, 1.0 - w1, w1

    r0, r1, wr0, wr1 = src_idx(H, out_h)
    c0, c1, wc0, wc1 = src_idx(W, out_w)
    rows = x[:, r0, :] * wr0[None, :, None] + x[:, r1, :] * wr1[None, :, None]
    out = rows[:, :, c0] * wc0[None, None, :] + rows[:, :, c1] * wc1[None, None, :]
    return out


def knn_affinity_dense(image_u8, n_neighbors=(20, 10), distance_weights=(2.0, 0.1)):
    """Dense KNN color-affinity matrix (pymatting knn_affinity semantics)."""
    # TODO(synk): pymatting's kd-tree KNN replaced with exact brute-force top_k.
    image = image_u8.astype(jnp.float32) / 255.0                       # (h, w, 3)
    h, w = image.shape[:2]
    n = h * w
    rgb = image.reshape(-1, 3)
    r, g, b = rgb[:, 0], rgb[:, 1], rgb[:, 2]
    x = jnp.tile(jnp.linspace(0.0, 1.0, w), h)
    y = jnp.repeat(jnp.linspace(0.0, 1.0, h), w)
    W = jnp.zeros((n, n), jnp.float32)
    for k, dw in zip(n_neighbors, distance_weights):
        f = jnp.stack([r, g, b, dw * x, dw * y], axis=1)               # (n, 5)
        # Pairwise distances via the gram trick (MXU matmul) instead of an
        # (n, n, 5) broadcast intermediate.
        sq = jnp.sum(f * f, axis=1)
        d2 = sq[:, None] + sq[None, :] - 2.0 * (f @ f.T)               # (n, n)
        _, nbrs = jax.lax.top_k(-d2, k)                                # (n, k) incl. self
        rows = jnp.repeat(jnp.arange(n), k)
        cols = nbrs.reshape(-1)
        ones = jnp.ones(rows.shape, jnp.float32)
        W = W.at[rows, cols].add(ones)                                 # (i, j) entries
        W = W.at[cols, rows].add(ones)                                 # (j, i) entries
    return W


def synthetic_dino_forward(img, feat_dim=FEAT_DIM):
    """Stand-in for forward_dino_v1(model, img) -> (1, 1 + n_patches, dim) tokens."""
    # TODO(synk): DINO ViT-S backbone not reproduced; deterministic linear
    #             patch-embedding stand-in with fixed weights.
    _, C, H, W = img.shape
    hp, wp = H // PATCH, W // PATCH
    patches = img.reshape(1, C, hp, PATCH, wp, PATCH)
    patches = patches.transpose(0, 2, 4, 1, 3, 5).reshape(hp * wp, C * PATCH * PATCH)
    w_embed = jax.random.normal(jax.random.PRNGKey(42),
                                (C * PATCH * PATCH, feat_dim), jnp.float32) * 0.02
    tokens = patches @ w_embed                                          # (P, D)
    cls = jnp.zeros((1, feat_dim), jnp.float32)
    return jnp.concatenate([cls, tokens], axis=0)[None]                 # (1, 1+P, D)


def dsm_forward(img, n_eigenvectors=N_EIGENVECTORS, lambda_color=LAMBDA_COLOR):
    # NCHW input. (The original module names shape[2]/shape[3] as w/h; here we
    # keep the row/column convention internally consistent so non-square inputs
    # also reshape correctly. For square images this matches the original.)
    H, W = img.shape[2], img.shape[3]
    h_map, w_map = H // 16, W // 16

    # --- DINO features -> (N, D) upsampled patch features -------------------
    attentions = synthetic_dino_forward(img)[0]                        # (1+P, D)
    attentions = attentions[1:]                                        # drop CLS
    attentions = attentions.T                                          # (D, P)
    attentions = attentions.reshape(attentions.shape[0], h_map, w_map)
    attentions = bilinear_resize_chw(attentions, 2 * h_map, 2 * w_map) # (D, 2h, 2w)
    attentions = attentions.reshape(attentions.shape[0], -1).T         # (N, D)

    # --- color affinity on the bilinearly-resized image ---------------------
    img_small = bilinear_resize_chw(img[0], 2 * h_map, 2 * w_map)      # (3, 2h, 2w)
    img_small = jnp.transpose(img_small, (1, 2, 0))                    # (2h, 2w, 3)
    img_small = (img_small - img_small.min()) / (img_small.max() - img_small.min()) * 255.0
    img_u8 = img_small.astype(jnp.uint8)
    color_affinity = knn_affinity_dense(img_u8)                        # (N, N)

    # --- Pallas hot path: similarity graph + Laplacian ----------------------
    L = dsm_laplacian(attentions, color_affinity, lambda_color)        # (N, N) f32

    # --- spectral decomposition ---------------------------------------------
    # TODO(synk): torch.linalg.eigh has no Pallas equivalent; use jnp.linalg.eigh.
    eigenvalues, eigenvectors = jnp.linalg.eigh(L)
    eigenvalues, eigenvectors = eigenvalues[1:], eigenvectors[:, 1:]
    med = jnp.median(eigenvectors, axis=0)
    mid = (jnp.max(eigenvectors, axis=0) + jnp.min(eigenvectors, axis=0)) / 2.0
    eigenvectors = jnp.where(med > mid, -eigenvectors, eigenvectors)
    eigenvectors = eigenvectors[:, :n_eigenvectors]
    eigenvectors = eigenvectors.reshape(2 * h_map, 2 * w_map, n_eigenvectors)
    eigenvectors = jnp.transpose(eigenvectors, (2, 0, 1))              # (n, 2h, 2w)

    # --- per-vector min-max -> uint8 -> nearest-neighbor resize to (H, W) ---
    vmin = eigenvectors.min(axis=(1, 2), keepdims=True)
    vmax = eigenvectors.max(axis=(1, 2), keepdims=True)
    vecs = ((eigenvectors - vmin) / (vmax - vmin) * 255.0).astype(jnp.uint8)
    # cv2.resize(v, (W, H), INTER_NEAREST): src = floor(dst * in/out)
    rr = jnp.floor(jnp.arange(H) * (2 * h_map) / H).astype(jnp.int32)
    cc = jnp.floor(jnp.arange(W) * (2 * w_map) / W).astype(jnp.int32)
    out = vecs[:, rr[:, None], cc[None, :]]                            # (n, H, W) uint8
    return out


if __name__ == "__main__":
    key = jax.random.PRNGKey(0)
    # 96x96 input -> h_map = w_map = 6 -> N = (2*6)*(2*6) = 144 graph nodes
    # (>= the 20 KNN neighbors required); Npad = 256 and the adaptive tile
    # clamps TM to 256, so the whole Laplacian runs as a single grid step.
    img = jax.random.uniform(key, (1, 3, 96, 96), dtype=jnp.float32)
    out = dsm_forward(img)
    out = jax.block_until_ready(out)
    assert out.shape == (N_EIGENVECTORS, 96, 96), out.shape
    assert out.dtype == jnp.uint8, out.dtype
    print("KERNEL_OK")
</pallas_src>

<mosaic_0001>
module attributes {stable_mosaic.version = 11 : i64} {
  func.func @_dsm_laplacian_kernel(%arg0: i32, %arg1: memref<256x32xf32, #tpu.memory_space<vmem>>, %arg2: memref<32x256xf32, #tpu.memory_space<vmem>>, %arg3: memref<256x256xbf16, #tpu.memory_space<vmem>>, %arg4: memref<256x256xf32, #tpu.memory_space<vmem>>) attributes {dimension_semantics = [#tpu.dimension_semantics<parallel>], iteration_bounds = array<i64: 1>, scalar_prefetch = 0 : i64, scratch_operands = 0 : i64, tpu.core_type = #tpu.core_type<tc>, window_params = [{transform_indices = @transform_0, window_bounds = array<i64: 256, 32>}, {pipeline_mode = #tpu.pipeline_mode<synchronous>, transform_indices = @transform_1, window_bounds = array<i64: 32, 256>}, {transform_indices = @transform_2, window_bounds = array<i64: 256, 256>}, {transform_indices = @transform_3, window_bounds = array<i64: 256, 256>}]} {
    %c0 = arith.constant 0 : index
    %c0_0 = arith.constant 0 : index
    %0 = vector.load %arg1[%c0, %c0_0] : memref<256x32xf32, #tpu.memory_space<vmem>>, vector<256x32xf32>
    %c0_1 = arith.constant 0 : index
    %c0_2 = arith.constant 0 : index
    %1 = vector.load %arg2[%c0_1, %c0_2] : memref<32x256xf32, #tpu.memory_space<vmem>>, vector<32x256xf32>
    %cst = arith.constant dense<0.000000e+00> : vector<256x256xf32>
    %2 = tpu.matmul %0, %1, %cst {dimension_numbers = #tpu.dot_dimension_numbers<[1], [0], [0], [1], [0, 0, 1, 1], [], []>} : vector<256x32xf32>, vector<32x256xf32>, vector<256x256xf32> -> vector<256x256xf32>
    %cst_3 = arith.constant 0.000000e+00 : f32
    %3 = vector.broadcast %cst_3 : f32 to vector<256x256xf32>
    %4 = arith.maximumf %2, %3 : vector<256x256xf32>
    %c0_4 = arith.constant 0 : index
    %c0_5 = arith.constant 0 : index
    %5 = vector.load %arg3[%c0_4, %c0_5] : memref<256x256xbf16, #tpu.memory_space<vmem>>, vector<256x256xbf16>
    %6 = arith.extf %5 : vector<256x256xbf16> to vector<256x256xf32>
    %cst_6 = arith.constant 1.000000e+01 : f32
    %7 = vector.broadcast %cst_6 : f32 to vector<256x256xf32>
    %8 = arith.mulf %7, %6 : vector<256x256xf32>
    %9 = arith.addf %4, %8 : vector<256x256xf32>
    %cst_7 = arith.constant dense<0.000000e+00> : vector<256xf32>
    %10 = vector.multi_reduction <add>, %9, %cst_7 [1] : vector<256x256xf32> to vector<256xf32>
    %11 = vector.shape_cast %10 : vector<256xf32> to vector<256x1xf32>
    %c256_i32 = arith.constant 256 : i32
    %12 = arith.muli %arg0, %c256_i32 : i32
    %13 = tpu.iota {dimensions = array<i32: 0>} : vector<256x256xi32>
    %14 = vector.broadcast %12 : i32 to vector<256x256xi32>
    %15 = arith.addi %14, %13 : vector<256x256xi32>
    %16 = tpu.iota {dimensions = array<i32: 1>} : vector<256x256xi32>
    %17 = arith.cmpi eq, %15, %16 : vector<256x256xi32>
    %18 = vector.broadcast %11 : vector<256x1xf32> to vector<256x256xf32>
    %19 = arith.subf %18, %9 : vector<256x256xf32>
    %cst_8 = arith.constant 0.000000e+00 : f32
    %20 = vector.broadcast %cst_8 : f32 to vector<256x256xf32>
    %21 = arith.subf %20, %9 : vector<256x256xf32>
    %22 = arith.select %17, %19, %21 : vector<256x256xi1>, vector<256x256xf32>
    %c0_9 = arith.constant 0 : index
    %c0_10 = arith.constant 0 : index
    %23 = vector.load %arg4[%c0_9, %c0_10] : memref<256x256xf32, #tpu.memory_space<vmem>>, vector<256x256xf32>
    tpu.vector_store %arg4[%c0_9, %c0_10], %22 {strides = array<i32>} : memref<256x256xf32, #tpu.memory_space<vmem>>, vector<256x256xf32>,
    return
  }
  func.func @transform_0(%arg0: i32) -> (i32, i32) {
    %c0_i32 = arith.constant 0 : i32
    %c0_i32_0 = arith.constant 0 : i32
    return %arg0, %c0_i32 : i32, i32
  }
  func.func @transform_1(%arg0: i32) -> (i32, i32) {
    %c0_i32 = arith.constant 0 : i32
    %c0_i32_0 = arith.constant 0 : i32
    %c0_i32_1 = arith.constant 0 : i32
    return %c0_i32, %c0_i32_0 : i32, i32
  }
  func.func @transform_2(%arg0: i32) -> (i32, i32) {
    %c0_i32 = arith.constant 0 : i32
    %c0_i32_0 = arith.constant 0 : i32
    return %arg0, %c0_i32 : i32, i32
  }
  func.func @transform_3(%arg0: i32) -> (i32, i32) {
    %c0_i32 = arith.constant 0 : i32
    %c0_i32_0 = arith.constant 0 : i32
    return %arg0, %c0_i32 : i32, i32
  }
}

</mosaic_0001>

<llo_original>
// kernel: tpu_custom_call.1
$region0: #{tpu_custom_call.1}
  #allocation0 [shape = 'u32[]', space=smem, size = 0x4, offset = 0x4, fixed_abs, tag = 'smem constant byte address 0x4 - core index']
  #allocation1 [shape = 'u32[144,128]{1,0:T(1,128)}', space=vmem, size = 0x12000, scoped, tag = 'internal scratch']
  %s0 = inlined_call_operand.vmem [shape: f32[256,32], index: 0, kind: input, shape index: {}]
  %s1 = inlined_call_operand.vmem [shape: f32[32,256], index: 1, kind: input, shape index: {}]
  %s2 = inlined_call_operand.vmem [shape: bf16[256,256], index: 2, kind: input, shape index: {}]
  %s3 = inlined_call_operand.hbm [shape: f32[256,256], index: 3, kind: output, shape index: {}]
  %s4 = sld [smem:[#allocation0]]
  $region22: #{tpu_custom_call.1} parent=0
    _
  %s6 = ssub.s32 1, %s4
  %s7 = scalar_select 0, %s6, %s4
  $region1: #{tpu_custom_call.1} parent=0
    #allocation2 [shape = 'u8[262144]{0}', space=vmem, size = 0x40000, scoped, tag = 'output window, operand 0, single buffered']
    #allocation3 [shape = 's32[1]{0}', space=sflag, size = 0x4, scoped, tag = 'scoped memory for tpu_custom_call.1']
    %8 = vsyncpa [#allocation3], 0
    // Predicated region
    $region2: #{tpu_custom_call.1} parent=1 // pred_check
      _
    $region3: #{tpu_custom_call.1} parent=1 // pred_check_branch
      %10 = sbr.rel (0) target = $region5
    $region4: #{tpu_custom_call.1} parent=1 // pred_region
      _
    $region5: #{tpu_custom_call.1} parent=1 // pred_fallthru
      _
    // Predicated region
    $region6: #{tpu_custom_call.1} parent=1 // pred_check
      _
    $region7: #{tpu_custom_call.1} parent=1 // pred_check_branch
      %12 = sbr.rel (0) target = $region9
    $region8: #{tpu_custom_call.1} parent=1 // pred_region
      _
    $region9: #{tpu_custom_call.1} parent=1 // pred_fallthru
      _
    // Predicated region
    $region10: #{tpu_custom_call.1} parent=1 // pred_check
      _
    $region11: #{tpu_custom_call.1} parent=1 // pred_check_branch
      %14 = sbr.rel (0) target = $region13
    $region12: #{tpu_custom_call.1} parent=1 // pred_region
      _
    $region13: #{tpu_custom_call.1} parent=1 // pred_fallthru
      _
    %v15 = vld [vmem:[%s0] sm:$0xff]
    %v16 = vld [vmem:[%s0 + $0x8] sm:$0xff]
    %v17 = vld [vmem:[%s0 + $0x10] sm:$0xff]
    %v18 = vld [vmem:[%s0 + $0x18] sm:$0xff]
    %v19 = vld [vmem:[%s0 + $0x20] sm:$0xff]
    %v20 = vld [vmem:[%s0 + $0x28] sm:$0xff]
    %v21 = vld [vmem:[%s0 + $0x30] sm:$0xff]
    %v22 = vld [vmem:[%s0 + $0x38] sm:$0xff]
    %v23 = vld [vmem:[%s0 + $0x40] sm:$0xff]
    %v24 = vld [vmem:[%s0 + $0x48] sm:$0xff]
    %v25 = vld [vmem:[%s0 + $0x50] sm:$0xff]
    %v26 = vld [vmem:[%s0 + $0x58] sm:$0xff]
    %v27 = vld [vmem:[%s0 + $0x60] sm:$0xff]
    %v28 = vld [vmem:[%s0 + $0x68] sm:$0xff]
    %v29 = vld [vmem:[%s0 + $0x70] sm:$0xff]
    %v30 = vld [vmem:[%s0 + $0x78] sm:$0xff]
    %v31 = vld [vmem:[%s0 + $0x80] sm:$0xff]
    %v32 = vld [vmem:[%s0 + $0x88] sm:$0xff]
    %v33 = vld [vmem:[%s0 + $0x90] sm:$0xff]
    %v34 = vld [vmem:[%s0 + $0x98] sm:$0xff]
    %v35 = vld [vmem:[%s0 + $0xa0] sm:$0xff]
    %v36 = vld [vmem:[%s0 + $0xa8] sm:$0xff]
    %v37 = vld [vmem:[%s0 + $0xb0] sm:$0xff]
    %v38 = vld [vmem:[%s0 + $0xb8] sm:$0xff]
    %v39 = vld [vmem:[%s0 + $0xc0] sm:$0xff]
    %v40 = vld [vmem:[%s0 + $0xc8] sm:$0xff]
    %v41 = vld [vmem:[%s0 + $0xd0] sm:$0xff]
    %v42 = vld [vmem:[%s0 + $0xd8] sm:$0xff]
    %v43 = vld [vmem:[%s0 + $0xe0] sm:$0xff]
    %v44 = vld [vmem:[%s0 + $0xe8] sm:$0xff]
    %v45 = vld [vmem:[%s0 + $0xf0] sm:$0xff]
    %v46 = vld [vmem:[%s0 + $0xf8] sm:$0xff]
    %v47 = vld [vmem:[%s1] sm:$0xff]
    %v48 = vld [vmem:[%s1 + $0x8] sm:$0xff]
    %v49 = vld [vmem:[%s1 + $0x10] sm:$0xff]
    %v50 = vld [vmem:[%s1 + $0x18] sm:$0xff]
    %v51 = vld [vmem:[%s1 + $0x20] sm:$0xff]
    %v52 = vld [vmem:[%s1 + $0x28] sm:$0xff]
    %v53 = vld [vmem:[%s1 + $0x30] sm:$0xff]
    %v54 = vld [vmem:[%s1 + $0x38] sm:$0xff]
    %vm55 = vcmask 261120
    %v57 = vsel %vm55, %v15, 0
    %v60 = vsel %vm55, %v16, 0
    %v63 = vsel %vm55, %v17, 0
    %v66 = vsel %vm55, %v18, 0
    %v69 = vsel %vm55, %v19, 0
    %v72 = vsel %vm55, %v20, 0
    %v75 = vsel %vm55, %v21, 0
    %v78 = vsel %vm55, %v22, 0
    %v81 = vsel %vm55, %v23, 0
    %v84 = vsel %vm55, %v24, 0
    %v87 = vsel %vm55, %v25, 0
    %v90 = vsel %vm55, %v26, 0
    %v93 = vsel %vm55, %v27, 0
    %v96 = vsel %vm55, %v28, 0
    %v99 = vsel %vm55, %v29, 0
    %v102 = vsel %vm55, %v30, 0
    %v105 = vsel %vm55, %v31, 0
    %v108 = vsel %vm55, %v32, 0
    %v111 = vsel %vm55, %v33, 0
    %v114 = vsel %vm55, %v34, 0
    %v117 = vsel %vm55, %v35, 0
    %v120 = vsel %vm55, %v36, 0
    %v123 = vsel %vm55, %v37, 0
    %v126 = vsel %vm55, %v38, 0
    %v129 = vsel %vm55, %v39, 0
    %v132 = vsel %vm55, %v40, 0
    %v135 = vsel %vm55, %v41, 0
    %v138 = vsel %vm55, %v42, 0
    %v141 = vsel %vm55, %v43, 0
    %v144 = vsel %vm55, %v44, 0
    %v147 = vsel %vm55, %v45, 0
    %v150 = vsel %vm55, %v46, 0
    %152 = vmatprep.subr.mxu0 %v48
    %153 = vmatpush1.msra.mxu0 %v47
    %154 = vmatprep.subr.mxu0 %v50
    %155 = vmatpush1.msra.mxu0 %v49
    %156 = vmatprep.subr.mxu0 %v52
    %157 = vmatpush1.msra.mxu0 %v51
    %158 = vmatprep.subr.mxu0 %v54
    %159 = vmatpush1.msra.mxu0 %v53
    %160 = vmatprep.subr.mxu0 0.0
    %161 = vmatpush1.msra.mxu0 0.0
    %162 = vmatprep.subr.mxu0 0.0
    %163 = vmatpush1.msra.mxu0 0.0
    %164 = vmatprep.subr.mxu0 0.0
    %165 = vmatpush1.msra.mxu0 0.0
    %166 = vmatprep.subr.mxu0 0.0
    %167 = vmatpush1.msra.mxu0 0.0
    %168 = vmatprep.subr.mxu0 0.0
    %169 = vmatpush1.msra.mxu0 0.0
    %170 = vmatprep.subr.mxu0 0.0
    %171 = vmatpush1.msra.mxu0 0.0
    %172 = vmatprep.subr.mxu0 0.0
    %173 = vmatpush1.msra.mxu0 0.0
    %174 = vmatprep.subr.mxu0 0.0
    %175 = vmatpush1.msra.mxu0 0.0
    %176 = vmatprep.subr.mxu0 0.0
    %177 = vmatpush1.msra.mxu0 0.0
    %178 = vmatprep.subr.mxu0 0.0
    %179 = vmatpush1.msra.mxu0 0.0
    %180 = vmatprep.subr.mxu0 0.0
    %181 = vmatpush1.msra.mxu0 0.0
    %182 = vmatprep.subr.mxu0 0.0
    %183 = vmatpush1.msra.mxu0 0.0
    %184 = vmatprep.subr.mxu0 0.0
    %185 = vmatpush1.msra.mxu0 0.0
    %186 = vmatprep.subr.mxu0 0.0
    %187 = vmatpush1.msra.mxu0 0.0
    %188 = vmatprep.subr.mxu0 0.0
    %189 = vmatpush1.msra.mxu0 0.0
    %190 = vmatprep.subr.mxu0 0.0
    %191 = vmatpush1.msra.mxu0 0.0
    %192 = vmatprep.subr.mxu0 0.0
    %193 = vmatpush1.msra.mxu0 0.0
    %194 = vmatprep.subr.mxu0 0.0
    %195 = vmatpush1.msra.mxu0 0.0
    %196 = vmatprep.subr.mxu0 0.0
    %197 = vmatpush1.msra.mxu0 0.0
    %198 = vmatprep.subr.mxu0 0.0
    %199 = vmatpush1.msra.mxu0 0.0
    %200 = vmatprep.subr.mxu0 0.0
    %201 = vmatpush1.msra.mxu0 0.0
    %202 = vmatprep.subr.mxu0 0.0
    %203 = vmatpush1.msra.mxu0 0.0
    %204 = vmatprep.subr.mxu0 0.0
    %205 = vmatpush1.msra.mxu0 0.0
    %206 = vmatprep.subr.mxu0 0.0
    %207 = vmatpush1.msra.mxu0 0.0
    %208 = vmatprep.subr.mxu0 0.0
    %209 = vmatpush1.msra.mxu0 0.0
    %210 = vmatprep.subr.mxu0 0.0
    %211 = vmatpush1.msra.mxu0 0.0
    %212 = vmatprep.subr.mxu0 0.0
    %213 = vmatpush1.msra.mxu0 0.0
    %214 = vmatprep.subr.mxu0 0.0
    %215 = vmatpush1.msra.mxu0 0.0
    %216 = vmatprep.mubr.f32.mxu0 0.0
    %217 = vmatmul.mubr.f32.gmra.mrb[0].mxu0 %v57
    %v218 = vpop.f32.mrb[0].mxu0
    %v219 = vadd.f32 0.0, %v218
    %v220 = vpop.f32.mrb[0].mxu0
    %v221 = vadd.f32 0.0, %v220
    %222 = vmatprep.mubr.f32.mxu0 0.0
    %223 = vmatmul.mubr.f32.gmra.mrb[0].mxu0 %v60
    %v224 = vpop.f32.mrb[0].mxu0
    %v225 = vadd.f32 0.0, %v224
    %v226 = vpop.f32.mrb[0].mxu0
    %v227 = vadd.f32 0.0, %v226
    %228 = vmatprep.mubr.f32.mxu0 0.0
    %229 = vmatmul.mubr.f32.gmra.mrb[0].mxu0 %v63
    %v230 = vpop.f32.mrb[0].mxu0
    %v231 = vadd.f32 0.0, %v230
    %v232 = vpop.f32.mrb[0].mxu0
    %v233 = vadd.f32 0.0, %v232
    %234 = vmatprep.mubr.f32.mxu0 0.0
    %235 = vmatmul.mubr.f32.gmra.mrb[0].mxu0 %v66
    %v236 = vpop.f32.mrb[0].mxu0
    %v237 = vadd.f32 0.0, %v236
    %v238 = vpop.f32.mrb[0].mxu0
    %v239 = vadd.f32 0.0, %v238
    %240 = vmatprep.mubr.f32.mxu0 0.0
    %241 = vmatmul.mubr.f32.gmra.mrb[0].mxu0 %v69
    %v242 = vpop.f32.mrb[0].mxu0
    %v243 = vadd.f32 0.0, %v242
    %v244 = vpop.f32.mrb[0].mxu0
    %v245 = vadd.f32 0.0, %v244
    %246 = vmatprep.mubr.f32.mxu0 0.0
    %247 = vmatmul.mubr.f32.gmra.mrb[0].mxu0 %v72
    %v248 = vpop.f32.mrb[0].mxu0
    %v249 = vadd.f32 0.0, %v248
    %v250 = vpop.f32.mrb[0].mxu0
    %v251 = vadd.f32 0.0, %v250
    %252 = vmatprep.mubr.f32.mxu0 0.0
    %253 = vmatmul.mubr.f32.gmra.mrb[0].mxu0 %v75
    %v254 = vpop.f32.mrb[0].mxu0
    %v255 = vadd.f32 0.0, %v254
    %v256 = vpop.f32.mrb[0].mxu0
    %v257 = vadd.f32 0.0, %v256
    %258 = vmatprep.mubr.f32.mxu0 0.0
    %259 = vmatmul.mubr.f32.gmra.mrb[0].mxu0 %v78
    %v260 = vpop.f32.mrb[0].mxu0
    %v261 = vadd.f32 0.0, %v260
    %v262 = vpop.f32.mrb[0].mxu0
    %v263 = vadd.f32 0.0, %v262
    %264 = vmatprep.mubr.f32.mxu0 0.0
    %265 = vmatmul.mubr.f32.gmra.mrb[0].mxu0 %v81
    %v266 = vpop.f32.mrb[0].mxu0
    %v267 = vadd.f32 0.0, %v266
    %v268 = vpop.f32.mrb[0].mxu0
    %v269 = vadd.f32 0.0, %v268
    %270 = vmatprep.mubr.f32.mxu0 0.0
    %271 = vmatmul.mubr.f32.gmra.mrb[0].mxu0 %v84
    %v272 = vpop.f32.mrb[0].mxu0
    %v273 = vadd.f32 0.0, %v272
    %v274 = vpop.f32.mrb[0].mxu0
    %v275 = vadd.f32 0.0, %v274
    %276 = vmatprep.mubr.f32.mxu0 0.0
    %277 = vmatmul.mubr.f32.gmra.mrb[0].mxu0 %v87
    %v278 = vpop.f32.mrb[0].mxu0
    %v279 = vadd.f32 0.0, %v278
    %v280 = vpop.f32.mrb[0].mxu0
    %v281 = vadd.f32 0.0, %v280
    %282 = vmatprep.mubr.f32.mxu0 0.0
    %283 = vmatmul.mubr.f32.gmra.mrb[0].mxu0 %v90
    %v284 = vpop.f32.mrb[0].mxu0
    %v285 = vadd.f32 0.0, %v284
    %v286 = vpop.f32.mrb[0].mxu0
    %v287 = vadd.f32 0.0, %v286
    %288 = vmatprep.mubr.f32.mxu0 0.0
    %289 = vmatmul.mubr.f32.gmra.mrb[0].mxu0 %v93
    %v290 = vpop.f32.mrb[0].mxu0
    %v291 = vadd.f32 0.0, %v290
    %v292 = vpop.f32.mrb[0].mxu0
    %v293 = vadd.f32 0.0, %v292
    %294 = vmatprep.mubr.f32.mxu0 0.0
    %295 = vmatmul.mubr.f32.gmra.mrb[0].mxu0 %v96
    %v296 = vpop.f32.mrb[0].mxu0
    %v297 = vadd.f32 0.0, %v296
    %v298 = vpop.f32.mrb[0].mxu0
    %v299 = vadd.f32 0.0, %v298
    %300 = vmatprep.mubr.f32.mxu0 0.0
    %301 = vmatmul.mubr.f32.gmra.mrb[0].mxu0 %v99
    %v302 = vpop.f32.mrb[0].mxu0
    %v303 = vadd.f32 0.0, %v302
    %v304 = vpop.f32.mrb[0].mxu0
    %v305 = vadd.f32 0.0, %v304
    %306 = vmatprep.mubr.f32.mxu0 0.0
    %307 = vmatmul.mubr.f32.gmra.mrb[0].mxu0 %v102
    %v308 = vpop.f32.mrb[0].mxu0
    %v309 = vadd.f32 0.0, %v308
    %v310 = vpop.f32.mrb[0].mxu0
    %v311 = vadd.f32 0.0, %v310
    %312 = vmatprep.mubr.f32.mxu0 0.0
    %313 = vmatmul.mubr.f32.gmra.mrb[0].mxu0 %v105
    %v314 = vpop.f32.mrb[0].mxu0
    %v315 = vadd.f32 0.0, %v314
    %v316 = vpop.f32.mrb[0].mxu0
    %v317 = vadd.f32 0.0, %v316
    %318 = vmatprep.mubr.f32.mxu0 0.0
    %319 = vmatmul.mubr.f32.gmra.mrb[0].mxu0 %v108
    %v320 = vpop.f32.mrb[0].mxu0
    %v321 = vadd.f32 0.0, %v320
    %v322 = vpop.f32.mrb[0].mxu0
    %v323 = vadd.f32 0.0, %v322
    %324 = vmatprep.mubr.f32.mxu0 0.0
    %325 = vmatmul.mubr.f32.gmra.mrb[0].mxu0 %v111
    %v326 = vpop.f32.mrb[0].mxu0
    %v327 = vadd.f32 0.0, %v326
    %v328 = vpop.f32.mrb[0].mxu0
    %v329 = vadd.f32 0.0, %v328
    %330 = vmatprep.mubr.f32.mxu0 0.0
    %331 = vmatmul.mubr.f32.gmra.mrb[0].mxu0 %v114
    %v332 = vpop.f32.mrb[0].mxu0
    %v333 = vadd.f32 0.0, %v332
    %v334 = vpop.f32.mrb[0].mxu0
    %v335 = vadd.f32 0.0, %v334
    %336 = vmatprep.mubr.f32.mxu0 0.0
    %337 = vmatmul.mubr.f32.gmra.mrb[0].mxu0 %v117
    %v338 = vpop.f32.mrb[0].mxu0
    %v339 = vadd.f32 0.0, %v338
    %v340 = vpop.f32.mrb[0].mxu0
    %v341 = vadd.f32 0.0, %v340
    %342 = vmatprep.mubr.f32.mxu0 0.0
    %343 = vmatmul.mubr.f32.gmra.mrb[0].mxu0 %v120
    %v344 = vpop.f32.mrb[0].mxu0
    %v345 = vadd.f32 0.0, %v344
    %v346 = vpop.f32.mrb[0].mxu0
    %v347 = vadd.f32 0.0, %v346
    %348 = vmatprep.mubr.f32.mxu0 0.0
    %349 = vmatmul.mubr.f32.gmra.mrb[0].mxu0 %v123
    %v350 = vpop.f32.mrb[0].mxu0
    %v351 = vadd.f32 0.0, %v350
    %v352 = vpop.f32.mrb[0].mxu0
    %v353 = vadd.f32 0.0, %v352
    %354 = vmatprep.mubr.f32.mxu0 0.0
    %355 = vmatmul.mubr.f32.gmra.mrb[0].mxu0 %v126
    %v356 = vpop.f32.mrb[0].mxu0
    %v357 = vadd.f32 0.0, %v356
    %v358 = vpop.f32.mrb[0].mxu0
    %v359 = vadd.f32 0.0, %v358
    %360 = vmatprep.mubr.f32.mxu0 0.0
    %361 = vmatmul.mubr.f32.gmra.mrb[0].mxu0 %v129
    %v362 = vpop.f32.mrb[0].mxu0
    %v363 = vadd.f32 0.0, %v362
    %v364 = vpop.f32.mrb[0].mxu0
    %v365 = vadd.f32 0.0, %v364
    %366 = vmatprep.mubr.f32.mxu0 0.0
    %367 = vmatmul.mubr.f32.gmra.mrb[0].mxu0 %v132
    %v368 = vpop.f32.mrb[0].mxu0
    %v369 = vadd.f32 0.0, %v368
    %v370 = vpop.f32.mrb[0].mxu0
    %v371 = vadd.f32 0.0, %v370
    %372 = vmatprep.mubr.f32.mxu0 0.0
    %373 = vmatmul.mubr.f32.gmra.mrb[0].mxu0 %v135
    %v374 = vpop.f32.mrb[0].mxu0
    %v375 = vadd.f32 0.0, %v374
    %v376 = vpop.f32.mrb[0].mxu0
    %v377 = vadd.f32 0.0, %v376
    %378 = vmatprep.mubr.f32.mxu0 0.0
    %379 = vmatmul.mubr.f32.gmra.mrb[0].mxu0 %v138
    %v380 = vpop.f32.mrb[0].mxu0
    %v381 = vadd.f32 0.0, %v380
    %v382 = vpop.f32.mrb[0].mxu0
    %v383 = vadd.f32 0.0, %v382
    %384 = vmatprep.mubr.f32.mxu0 0.0
    %385 = vmatmul.mubr.f32.gmra.mrb[0].mxu0 %v141
    %v386 = vpop.f32.mrb[0].mxu0
    %v387 = vadd.f32 0.0, %v386
    %v388 = vpop.f32.mrb[0].mxu0
    %v389 = vadd.f32 0.0, %v388
    %390 = vmatprep.mubr.f32.mxu0 0.0
    %391 = vmatmul.mubr.f32.gmra.mrb[0].mxu0 %v144
    %v392 = vpop.f32.mrb[0].mxu0
    %v393 = vadd.f32 0.0, %v392
    %v394 = vpop.f32.mrb[0].mxu0
    %v395 = vadd.f32 0.0, %v394
    %396 = vmatprep.mubr.f32.mxu0 0.0
    %397 = vmatmul.mubr.f32.gmra.mrb[0].mxu0 %v147
    %v398 = vpop.f32.mrb[0].mxu0
    %v399 = vadd.f32 0.0, %v398
    %v400 = vpop.f32.mrb[0].mxu0
    %v401 = vadd.f32 0.0, %v400
    %402 = vmatprep.mubr.f32.mxu0 0.0
    %403 = vmatmul.mubr.f32.gmra.mrb[0].mxu0 %v150
    %v404 = vpop.f32.mrb[0].mxu0
    %v405 = vadd.f32 0.0, %v404
    %v406 = vpop.f32.mrb[0].mxu0
    %v407 = vadd.f32 0.0, %v406
    %408 = vdwg.mxu0
    %v409 = vmax.f32 %v219, 0.0
    %v410 = vmax.f32 %v221, 0.0
    %v411 = vmax.f32 %v225, 0.0
    %v412 = vmax.f32 %v227, 0.0
    %v413 = vmax.f32 %v231, 0.0
    %v414 = vmax.f32 %v233, 0.0
    %v415 = vmax.f32 %v237, 0.0
    %v416 = vmax.f32 %v239, 0.0
    %v417 = vmax.f32 %v243, 0.0
    %v418 = vmax.f32 %v245, 0.0
    %v419 = vmax.f32 %v249, 0.0
    %v420 = vmax.f32 %v251, 0.0
    %v421 = vmax.f32 %v255, 0.0
    %v422 = vmax.f32 %v257, 0.0
    %v423 = vmax.f32 %v261, 0.0
    %v424 = vmax.f32 %v263, 0.0
    %v425 = vmax.f32 %v267, 0.0
    %v426 = vmax.f32 %v269, 0.0
    %v427 = vmax.f32 %v273, 0.0
    %v428 = vmax.f32 %v275, 0.0
    %v429 = vmax.f32 %v279, 0.0
    %v430 = vmax.f32 %v281, 0.0
    %v431 = vmax.f32 %v285, 0.0
    %v432 = vmax.f32 %v287, 0.0
    %v433 = vmax.f32 %v291, 0.0
    %v434 = vmax.f32 %v293, 0.0
    %v435 = vmax.f32 %v297, 0.0
    %v436 = vmax.f32 %v299, 0.0
    %v437 = vmax.f32 %v303, 0.0
    %v438 = vmax.f32 %v305, 0.0
    %v439 = vmax.f32 %v309, 0.0
    %v440 = vmax.f32 %v311, 0.0
    %v441 = vmax.f32 %v315, 0.0
    %v442 = vmax.f32 %v317, 0.0
    %v443 = vmax.f32 %v321, 0.0
    %v444 = vmax.f32 %v323, 0.0
    %v445 = vmax.f32 %v327, 0.0
    %v446 = vmax.f32 %v329, 0.0
    %v447 = vmax.f32 %v333, 0.0
    %v448 = vmax.f32 %v335, 0.0
    %v449 = vmax.f32 %v339, 0.0
    %v450 = vmax.f32 %v341, 0.0
    %v451 = vmax.f32 %v345, 0.0
    %v452 = vmax.f32 %v347, 0.0
    %v453 = vmax.f32 %v351, 0.0
    %v454 = vmax.f32 %v353, 0.0
    %v455 = vmax.f32 %v357, 0.0
    %v456 = vmax.f32 %v359, 0.0
    %v457 = vmax.f32 %v363, 0.0
    %v458 = vmax.f32 %v365, 0.0
    %v459 = vmax.f32 %v369, 0.0
    %v460 = vmax.f32 %v371, 0.0
    %v461 = vmax.f32 %v375, 0.0
    %v462 = vmax.f32 %v377, 0.0
    %v463 = vmax.f32 %v381, 0.0
    %v464 = vmax.f32 %v383, 0.0
    %v465 = vmax.f32 %v387, 0.0
    %v466 = vmax.f32 %v389, 0.0
    %v467 = vmax.f32 %v393, 0.0
    %v468 = vmax.f32 %v395, 0.0
    %v469 = vmax.f32 %v399, 0.0
    %v470 = vmax.f32 %v401, 0.0
    %v471 = vmax.f32 %v405, 0.0
    %v472 = vmax.f32 %v407, 0.0
    %v473 = vld [vmem:[%s2] sm:$0xff]
    %v474 = vld [vmem:[%s2 + $0x8] sm:$0xff]
    %v475 = vld [vmem:[%s2 + $0x10] sm:$0xff]
    %v476 = vld [vmem:[%s2 + $0x18] sm:$0xff]
    %v477 = vld [vmem:[%s2 + $0x20] sm:$0xff]
    %v478 = vld [vmem:[%s2 + $0x28] sm:$0xff]
    %v479 = vld [vmem:[%s2 + $0x30] sm:$0xff]
    %v480 = vld [vmem:[%s2 + $0x38] sm:$0xff]
    %v481 = vld [vmem:[%s2 + $0x40] sm:$0xff]
    %v482 = vld [vmem:[%s2 + $0x48] sm:$0xff]
    %v483 = vld [vmem:[%s2 + $0x50] sm:$0xff]
    %v484 = vld [vmem:[%s2 + $0x58] sm:$0xff]
    %v485 = vld [vmem:[%s2 + $0x60] sm:$0xff]
    %v486 = vld [vmem:[%s2 + $0x68] sm:$0xff]
    %v487 = vld [vmem:[%s2 + $0x70] sm:$0xff]
    %v488 = vld [vmem:[%s2 + $0x78] sm:$0xff]
    %v489 = vld [vmem:[%s2 + $0x80] sm:$0xff]
    %v490 = vld [vmem:[%s2 + $0x88] sm:$0xff]
    %v491 = vld [vmem:[%s2 + $0x90] sm:$0xff]
    %v492 = vld [vmem:[%s2 + $0x98] sm:$0xff]
    %v493 = vld [vmem:[%s2 + $0xa0] sm:$0xff]
    %v494 = vld [vmem:[%s2 + $0xa8] sm:$0xff]
    %v495 = vld [vmem:[%s2 + $0xb0] sm:$0xff]
    %v496 = vld [vmem:[%s2 + $0xb8] sm:$0xff]
    %v497 = vld [vmem:[%s2 + $0xc0] sm:$0xff]
    %v498 = vld [vmem:[%s2 + $0xc8] sm:$0xff]
    %v499 = vld [vmem:[%s2 + $0xd0] sm:$0xff]
    %v500 = vld [vmem:[%s2 + $0xd8] sm:$0xff]
    %v501 = vld [vmem:[%s2 + $0xe0] sm:$0xff]
    %v502 = vld [vmem:[%s2 + $0xe8] sm:$0xff]
    %v503 = vld [vmem:[%s2 + $0xf0] sm:$0xff]
    %v504 = vld [vmem:[%s2 + $0xf8] sm:$0xff]
    %v505 = vunpack.c.l.bf16 %v473
    %v506 = vunpack.c.h.bf16 %v473
    %v507 = vunpack.c.l.bf16 %v474
    %v508 = vunpack.c.h.bf16 %v474
    %v509 = vunpack.c.l.bf16 %v475
    %v510 = vunpack.c.h.bf16 %v475
    %v511 = vunpack.c.l.bf16 %v476
    %v512 = vunpack.c.h.bf16 %v476
    %v513 = vunpack.c.l.bf16 %v477
    %v514 = vunpack.c.h.bf16 %v477
    %v515 = vunpack.c.l.bf16 %v478
    %v516 = vunpack.c.h.bf16 %v478
    %v517 = vunpack.c.l.bf16 %v479
    %v518 = vunpack.c.h.bf16 %v479
    %v519 = vunpack.c.l.bf16 %v480
    %v520 = vunpack.c.h.bf16 %v480
    %v521 = vunpack.c.l.bf16 %v481
    %v522 = vunpack.c.h.bf16 %v481
    %v523 = vunpack.c.l.bf16 %v482
    %v524 = vunpack.c.h.bf16 %v482
    %v525 = vunpack.c.l.bf16 %v483
    %v526 = vunpack.c.h.bf16 %v483
    %v527 = vunpack.c.l.bf16 %v484
    %v528 = vunpack.c.h.bf16 %v484
    %v529 = vunpack.c.l.bf16 %v485
    %v530 = vunpack.c.h.bf16 %v485
    %v531 = vunpack.c.l.bf16 %v486
    %v532 = vunpack.c.h.bf16 %v486
    %v533 = vunpack.c.l.bf16 %v487
    %v534 = vunpack.c.h.bf16 %v487
    %v535 = vunpack.c.l.bf16 %v488
    %v536 = vunpack.c.h.bf16 %v488
    %v537 = vunpack.c.l.bf16 %v489
    %v538 = vunpack.c.h.bf16 %v489
    %v539 = vunpack.c.l.bf16 %v490
    %v540 = vunpack.c.h.bf16 %v490
    %v541 = vunpack.c.l.bf16 %v491
    %v542 = vunpack.c.h.bf16 %v491
    %v543 = vunpack.c.l.bf16 %v492
    %v544 = vunpack.c.h.bf16 %v492
    %v545 = vunpack.c.l.bf16 %v493
    %v546 = vunpack.c.h.bf16 %v493
    %v547 = vunpack.c.l.bf16 %v494
    %v548 = vunpack.c.h.bf16 %v494
    %v549 = vunpack.c.l.bf16 %v495
    %v550 = vunpack.c.h.bf16 %v495
    %v551 = vunpack.c.l.bf16 %v496
    %v552 = vunpack.c.h.bf16 %v496
    %v553 = vunpack.c.l.bf16 %v497
    %v554 = vunpack.c.h.bf16 %v497
    %v555 = vunpack.c.l.bf16 %v498
    %v556 = vunpack.c.h.bf16 %v498
    %v557 = vunpack.c.l.bf16 %v499
    %v558 = vunpack.c.h.bf16 %v499
    %v559 = vunpack.c.l.bf16 %v500
    %v560 = vunpack.c.h.bf16 %v500
    %v561 = vunpack.c.l.bf16 %v501
    %v562 = vunpack.c.h.bf16 %v501
    %v563 = vunpack.c.l.bf16 %v502
    %v564 = vunpack.c.h.bf16 %v502
    %v565 = vunpack.c.l.bf16 %v503
    %v566 = vunpack.c.h.bf16 %v503
    %v567 = vunpack.c.l.bf16 %v504
    %v568 = vunpack.c.h.bf16 %v504
    %v569 = vmul.f32 %v505, 10.0
    %v570 = vmul.f32 %v506, 10.0
    %v571 = vmul.f32 %v507, 10.0
    %v572 = vmul.f32 %v508, 10.0
    %v573 = vmul.f32 %v509, 10.0
    %v574 = vmul.f32 %v510, 10.0
    %v575 = vmul.f32 %v511, 10.0
    %v576 = vmul.f32 %v512, 10.0
    %v577 = vmul.f32 %v513, 10.0
    %v578 = vmul.f32 %v514, 10.0
    %v579 = vmul.f32 %v515, 10.0
    %v580 = vmul.f32 %v516, 10.0
    %v581 = vmul.f32 %v517, 10.0
    %v582 = vmul.f32 %v518, 10.0
    %v583 = vmul.f32 %v519, 10.0
    %v584 = vmul.f32 %v520, 10.0
    %v585 = vmul.f32 %v521, 10.0
    %v586 = vmul.f32 %v522, 10.0
    %v587 = vmul.f32 %v523, 10.0
    %v588 = vmul.f32 %v524, 10.0
    %v589 = vmul.f32 %v525, 10.0
    %v590 = vmul.f32 %v526, 10.0
    %v591 = vmul.f32 %v527, 10.0
    %v592 = vmul.f32 %v528, 10.0
    %v593 = vmul.f32 %v529, 10.0
    %v594 = vmul.f32 %v530, 10.0
    %v595 = vmul.f32 %v531, 10.0
    %v596 = vmul.f32 %v532, 10.0
    %v597 = vmul.f32 %v533, 10.0
    %v598 = vmul.f32 %v534, 10.0
    %v599 = vmul.f32 %v535, 10.0
    %v600 = vmul.f32 %v536, 10.0
    %v601 = vmul.f32 %v537, 10.0
    %v602 = vmul.f32 %v538, 10.0
    %v603 = vmul.f32 %v539, 10.0
    %v604 = vmul.f32 %v540, 10.0
    %v605 = vmul.f32 %v541, 10.0
    %v606 = vmul.f32 %v542, 10.0
    %v607 = vmul.f32 %v543, 10.0
    %v608 = vmul.f32 %v544, 10.0
    %v609 = vmul.f32 %v545, 10.0
    %v610 = vmul.f32 %v546, 10.0
    %v611 = vmul.f32 %v547, 10.0
    %v612 = vmul.f32 %v548, 10.0
    %v613 = vmul.f32 %v549, 10.0
    %v614 = vmul.f32 %v550, 10.0
    %v615 = vmul.f32 %v551, 10.0
    %v616 = vmul.f32 %v552, 10.0
    %v617 = vmul.f32 %v553, 10.0
    %v618 = vmul.f32 %v554, 10.0
    %v619 = vmul.f32 %v555, 10.0
    %v620 = vmul.f32 %v556, 10.0
    %v621 = vmul.f32 %v557, 10.0
    %v622 = vmul.f32 %v558, 10.0
    %v623 = vmul.f32 %v559, 10.0
    %v624 = vmul.f32 %v560, 10.0
    %v625 = vmul.f32 %v561, 10.0
    %v626 = vmul.f32 %v562, 10.0
    %v627 = vmul.f32 %v563, 10.0
    %v628 = vmul.f32 %v564, 10.0
    %v629 = vmul.f32 %v565, 10.0
    %v630 = vmul.f32 %v566, 10.0
    %v631 = vmul.f32 %v567, 10.0
    %v632 = vmul.f32 %v568, 10.0
    %v633 = vadd.f32 %v409, %v569
    %v634 = vadd.f32 %v410, %v570
    %v635 = vadd.f32 %v411, %v571
    %v636 = vadd.f32 %v412, %v572
    %v637 = vadd.f32 %v413, %v573
    %v638 = vadd.f32 %v414, %v574
    %v639 = vadd.f32 %v415, %v575
    %v640 = vadd.f32 %v416, %v576
    %v641 = vadd.f32 %v417, %v577
    %v642 = vadd.f32 %v418, %v578
    %v643 = vadd.f32 %v419, %v579
    %v644 = vadd.f32 %v420, %v580
    %v645 = vadd.f32 %v421, %v581
    %v646 = vadd.f32 %v422, %v582
    %v647 = vadd.f32 %v423, %v583
    %v648 = vadd.f32 %v424, %v584
    %v649 = vadd.f32 %v425, %v585
    %v650 = vadd.f32 %v426, %v586
    %v651 = vadd.f32 %v427, %v587
    %v652 = vadd.f32 %v428, %v588
    %v653 = vadd.f32 %v429, %v589
    %v654 = vadd.f32 %v430, %v590
    %v655 = vadd.f32 %v431, %v591
    %v656 = vadd.f32 %v432, %v592
    %v657 = vadd.f32 %v433, %v593
    %v658 = vadd.f32 %v434, %v594
    %v659 = vadd.f32 %v435, %v595
    %v660 = vadd.f32 %v436, %v596
    %v661 = vadd.f32 %v437, %v597
    %v662 = vadd.f32 %v438, %v598
    %v663 = vadd.f32 %v439, %v599
    %v664 = vadd.f32 %v440, %v600
    %v665 = vadd.f32 %v441, %v601
    %v666 = vadd.f32 %v442, %v602
    %v667 = vadd.f32 %v443, %v603
    %v668 = vadd.f32 %v444, %v604
    %v669 = vadd.f32 %v445, %v605
    %v670 = vadd.f32 %v446, %v606
    %v671 = vadd.f32 %v447, %v607
    %v672 = vadd.f32 %v448, %v608
    %v673 = vadd.f32 %v449, %v609
    %v674 = vadd.f32 %v450, %v610
    %v675 = vadd.f32 %v451, %v611
    %v676 = vadd.f32 %v452, %v612
    %v677 = vadd.f32 %v453, %v613
    %v678 = vadd.f32 %v454, %v614
    %v679 = vadd.f32 %v455, %v615
    %v680 = vadd.f32 %v456, %v616
    %v681 = vadd.f32 %v457, %v617
    %v682 = vadd.f32 %v458, %v618
    %v683 = vadd.f32 %v459, %v619
    %v684 = vadd.f32 %v460, %v620
    %v685 = vadd.f32 %v461, %v621
    %v686 = vadd.f32 %v462, %v622
    %v687 = vadd.f32 %v463, %v623
    %v688 = vadd.f32 %v464, %v624
    %v689 = vadd.f32 %v465, %v625
    %v690 = vadd.f32 %v466, %v626
    %v691 = vadd.f32 %v467, %v627
    %v692 = vadd.f32 %v468, %v628
    %v693 = vadd.f32 %v469, %v629
    %v694 = vadd.f32 %v470, %v630
    %v695 = vadd.f32 %v471, %v631
    %v696 = vadd.f32 %v472, %v632
    %v697 = vadd.f32 %v633, %v634
    %698 = vadd.xlane.f32.xlu0 %v697
    %v699 = vpop.xlane.xlu0 %698
    %v700 = vadd.f32 %v635, %v636
    %701 = vadd.xlane.f32.xlu0 %v700
    %v702 = vpop.xlane.xlu0 %701
    %v703 = vadd.f32 %v637, %v638
    %704 = vadd.xlane.f32.xlu0 %v703
    %v705 = vpop.xlane.xlu0 %704
    %v706 = vadd.f32 %v639, %v640
    %707 = vadd.xlane.f32.xlu0 %v706
    %v708 = vpop.xlane.xlu0 %707
    %v709 = vadd.f32 %v641, %v642
    %710 = vadd.xlane.f32.xlu0 %v709
    %v711 = vpop.xlane.xlu0 %710
    %v712 = vadd.f32 %v643, %v644
    %713 = vadd.xlane.f32.xlu0 %v712
    %v714 = vpop.xlane.xlu0 %713
    %v715 = vadd.f32 %v645, %v646
    %716 = vadd.xlane.f32.xlu0 %v715
    %v717 = vpop.xlane.xlu0 %716
    %v718 = vadd.f32 %v647, %v648
    %719 = vadd.xlane.f32.xlu0 %v718
    %v720 = vpop.xlane.xlu0 %719
    %v721 = vadd.f32 %v649, %v650
    %722 = vadd.xlane.f32.xlu0 %v721
    %v723 = vpop.xlane.xlu0 %722
    %v724 = vadd.f32 %v651, %v652
    %725 = vadd.xlane.f32.xlu0 %v724
    %v726 = vpop.xlane.xlu0 %725
    %v727 = vadd.f32 %v653, %v654
    %728 = vadd.xlane.f32.xlu0 %v727
    %v729 = vpop.xlane.xlu0 %728
    %v730 = vadd.f32 %v655, %v656
    %731 = vadd.xlane.f32.xlu0 %v730
    %v732 = vpop.xlane.xlu0 %731
    %v733 = vadd.f32 %v657, %v658
    %734 = vadd.xlane.f32.xlu0 %v733
    %v735 = vpop.xlane.xlu0 %734
    %v736 = vadd.f32 %v659, %v660
    %737 = vadd.xlane.f32.xlu0 %v736
    %v738 = vpop.xlane.xlu0 %737
    %v739 = vadd.f32 %v661, %v662
    %740 = vadd.xlane.f32.xlu0 %v739
    %v741 = vpop.xlane.xlu0 %740
    %v742 = vadd.f32 %v663, %v664
    %743 = vadd.xlane.f32.xlu0 %v742
    %v744 = vpop.xlane.xlu0 %743
    %v745 = vadd.f32 %v665, %v666
    %746 = vadd.xlane.f32.xlu0 %v745
    %v747 = vpop.xlane.xlu0 %746
    %v748 = vadd.f32 %v667, %v668
    %749 = vadd.xlane.f32.xlu0 %v748
    %v750 = vpop.xlane.xlu0 %749
    %v751 = vadd.f32 %v669, %v670
    %752 = vadd.xlane.f32.xlu0 %v751
    %v753 = vpop.xlane.xlu0 %752
    %v754 = vadd.f32 %v671, %v672
    %755 = vadd.xlane.f32.xlu0 %v754
    %v756 = vpop.xlane.xlu0 %755
    %v757 = vadd.f32 %v673, %v674
    %758 = vadd.xlane.f32.xlu0 %v757
    %v759 = vpop.xlane.xlu0 %758
    %v760 = vadd.f32 %v675, %v676
    %761 = vadd.xlane.f32.xlu0 %v760
    %v762 = vpop.xlane.xlu0 %761
    %v763 = vadd.f32 %v677, %v678
    %764 = vadd.xlane.f32.xlu0 %v763
    %v765 = vpop.xlane.xlu0 %764
    %v766 = vadd.f32 %v679, %v680
    %767 = vadd.xlane.f32.xlu0 %v766
    %v768 = vpop.xlane.xlu0 %767
    %v769 = vadd.f32 %v681, %v682
    %770 = vadd.xlane.f32.xlu0 %v769
    %v771 = vpop.xlane.xlu0 %770
    %v772 = vadd.f32 %v683, %v684
    %773 = vadd.xlane.f32.xlu0 %v772
    %v774 = vpop.xlane.xlu0 %773
    %v775 = vadd.f32 %v685, %v686
    %776 = vadd.xlane.f32.xlu0 %v775
    %v777 = vpop.xlane.xlu0 %776
    %v778 = vadd.f32 %v687, %v688
    %779 = vadd.xlane.f32.xlu0 %v778
    %v780 = vpop.xlane.xlu0 %779
    %v781 = vadd.f32 %v689, %v690
    %782 = vadd.xlane.f32.xlu0 %v781
    %v783 = vpop.xlane.xlu0 %782
    %v784 = vadd.f32 %v691, %v692
    %785 = vadd.xlane.f32.xlu0 %v784
    %v786 = vpop.xlane.xlu0 %785
    %v787 = vadd.f32 %v693, %v694
    %788 = vadd.xlane.f32.xlu0 %v787
    %v789 = vpop.xlane.xlu0 %788
    %v790 = vadd.f32 %v695, %v696
    %791 = vadd.xlane.f32.xlu0 %v790
    %v792 = vpop.xlane.xlu0 %791
    %s793 = smul.u32 0, 256
    %v794 = vlaneseq
    %v795 = vshrl.u32 %v794, 7
    %v796 = vadd.s32 %v795, 8
    %v797 = vadd.s32 %v795, 16
    %v798 = vadd.s32 %v795, 24
    %v799 = vadd.s32 %v795, 32
    %v800 = vadd.s32 %v795, 40
    %v801 = vadd.s32 %v795, 48
    %v802 = vadd.s32 %v795, 56
    %v803 = vadd.s32 %v795, 64
    %v804 = vadd.s32 %v795, 72
    %v805 = vadd.s32 %v795, 80
    %v806 = vadd.s32 %v795, 88
    %v807 = vadd.s32 %v795, 96
    %v808 = vadd.s32 %v795, 104
    %v809 = vadd.s32 %v795, 112
    %v810 = vadd.s32 %v795, 120
    %v811 = vadd.s32 %v795, 128
    %v812 = vadd.s32 %v795, 136
    %v813 = vadd.s32 %v795, 144
    %v814 = vadd.s32 %v795, 152
    %v815 = vadd.s32 %v795, 160
    %v816 = vadd.s32 %v795, 168
    %v817 = vadd.s32 %v795, 176
    %v818 = vadd.s32 %v795, 184
    %v819 = vadd.s32 %v795, 192
    %v820 = vadd.s32 %v795, 200
    %v821 = vadd.s32 %v795, 208
    %v822 = vadd.s32 %v795, 216
    %v823 = vadd.s32 %v795, 224
    %v824 = vadd.s32 %v795, 232
    %v825 = vadd.s32 %v795, 240
    %v826 = vadd.s32 %v795, 248
    %v827 = vstv %s793
    %v828 = vadd.s32 %v827, %v795
    %v829 = vadd.s32 %v827, %v796
    %v830 = vadd.s32 %v827, %v797
    %v831 = vadd.s32 %v827, %v798
    %v832 = vadd.s32 %v827, %v799
    %v833 = vadd.s32 %v827, %v800
    %v834 = vadd.s32 %v827, %v801
    %v835 = vadd.s32 %v827, %v802
    %v836 = vadd.s32 %v827, %v803
    %v837 = vadd.s32 %v827, %v804
    %v838 = vadd.s32 %v827, %v805
    %v839 = vadd.s32 %v827, %v806
    %v840 = vadd.s32 %v827, %v807
    %v841 = vadd.s32 %v827, %v808
    %v842 = vadd.s32 %v827, %v809
    %v843 = vadd.s32 %v827, %v810
    %v844 = vadd.s32 %v827, %v811
    %v845 = vadd.s32 %v827, %v812
    %v846 = vadd.s32 %v827, %v813
    %v847 = vadd.s32 %v827, %v814
    %v848 = vadd.s32 %v827, %v815
    %v849 = vadd.s32 %v827, %v816
    %v850 = vadd.s32 %v827, %v817
    %v851 = vadd.s32 %v827, %v818
    %v852 = vadd.s32 %v827, %v819
    %v853 = vadd.s32 %v827, %v820
    %v854 = vadd.s32 %v827, %v821
    %v855 = vadd.s32 %v827, %v822
    %v856 = vadd.s32 %v827, %v823
    %v857 = vadd.s32 %v827, %v824
    %v858 = vadd.s32 %v827, %v825
    %v859 = vadd.s32 %v827, %v826
    %v860 = vlaneseq
    %v861 = vand.u32 %v860, 127
    %v862 = vadd.s32 %v861, 128
    %vm863 = vcmp.eq.s32.totalorder %v828, %v861
    %vm864 = vcmp.eq.s32.totalorder %v828, %v862
    %vm865 = vcmp.eq.s32.totalorder %v829, %v861
    %vm866 = vcmp.eq.s32.totalorder %v829, %v862
    %vm867 = vcmp.eq.s32.totalorder %v830, %v861
    %vm868 = vcmp.eq.s32.totalorder %v830, %v862
    %vm869 = vcmp.eq.s32.totalorder %v831, %v861
    %vm870 = vcmp.eq.s32.totalorder %v831, %v862
    %vm871 = vcmp.eq.s32.totalorder %v832, %v861
    %vm872 = vcmp.eq.s32.totalorder %v832, %v862
    %vm873 = vcmp.eq.s32.totalorder %v833, %v861
    %vm874 = vcmp.eq.s32.totalorder %v833, %v862
    %vm875 = vcmp.eq.s32.totalorder %v834, %v861
    %vm876 = vcmp.eq.s32.totalorder %v834, %v862
    %vm877 = vcmp.eq.s32.totalorder %v835, %v861
    %vm878 = vcmp.eq.s32.totalorder %v835, %v862
    %vm879 = vcmp.eq.s32.totalorder %v836, %v861
    %vm880 = vcmp.eq.s32.totalorder %v836, %v862
    %vm881 = vcmp.eq.s32.totalorder %v837, %v861
    %vm882 = vcmp.eq.s32.totalorder %v837, %v862
    %vm883 = vcmp.eq.s32.totalorder %v838, %v861
    %vm884 = vcmp.eq.s32.totalorder %v838, %v862
    %vm885 = vcmp.eq.s32.totalorder %v839, %v861
    %vm886 = vcmp.eq.s32.totalorder %v839, %v862
    %vm887 = vcmp.eq.s32.totalorder %v840, %v861
    %vm888 = vcmp.eq.s32.totalorder %v840, %v862
    %vm889 = vcmp.eq.s32.totalorder %v841, %v861
    %vm890 = vcmp.eq.s32.totalorder %v841, %v862
    %vm891 = vcmp.eq.s32.totalorder %v842, %v861
    %vm892 = vcmp.eq.s32.totalorder %v842, %v862
    %vm893 = vcmp.eq.s32.totalorder %v843, %v861
    %vm894 = vcmp.eq.s32.totalorder %v843, %v862
    %vm895 = vcmp.eq.s32.totalorder %v844, %v861
    %vm896 = vcmp.eq.s32.totalorder %v844, %v862
    %vm897 = vcmp.eq.s32.totalorder %v845, %v861
    %vm898 = vcmp.eq.s32.totalorder %v845, %v862
    %vm899 = vcmp.eq.s32.totalorder %v846, %v861
    %vm900 = vcmp.eq.s32.totalorder %v846, %v862
    %vm901 = vcmp.eq.s32.totalorder %v847, %v861
    %vm902 = vcmp.eq.s32.totalorder %v847, %v862
    %vm903 = vcmp.eq.s32.totalorder %v848, %v861
    %vm904 = vcmp.eq.s32.totalorder %v848, %v862
    %vm905 = vcmp.eq.s32.totalorder %v849, %v861
    %vm906 = vcmp.eq.s32.totalorder %v849, %v862
    %vm907 = vcmp.eq.s32.totalorder %v850, %v861
    %vm908 = vcmp.eq.s32.totalorder %v850, %v862
    %vm909 = vcmp.eq.s32.totalorder %v851, %v861
    %vm910 = vcmp.eq.s32.totalorder %v851, %v862
    %vm911 = vcmp.eq.s32.totalorder %v852, %v861
    %vm912 = vcmp.eq.s32.totalorder %v852, %v862
    %vm913 = vcmp.eq.s32.totalorder %v853, %v861
    %vm914 = vcmp.eq.s32.totalorder %v853, %v862
    %vm915 = vcmp.eq.s32.totalorder %v854, %v861
    %vm916 = vcmp.eq.s32.totalorder %v854, %v862
    %vm917 = vcmp.eq.s32.totalorder %v855, %v861
    %vm918 = vcmp.eq.s32.totalorder %v855, %v862
    %vm919 = vcmp.eq.s32.totalorder %v856, %v861
    %vm920 = vcmp.eq.s32.totalorder %v856, %v862
    %vm921 = vcmp.eq.s32.totalorder %v857, %v861
    %vm922 = vcmp.eq.s32.totalorder %v857, %v862
    %vm923 = vcmp.eq.s32.totalorder %v858, %v861
    %vm924 = vcmp.eq.s32.totalorder %v858, %v862
    %vm925 = vcmp.eq.s32.totalorder %v859, %v861
    %vm926 = vcmp.eq.s32.totalorder %v859, %v862
    %v927 = vsub.f32 %v699, %v633
    %v928 = vsub.f32 %v699, %v634
    %v929 = vsub.f32 %v702, %v635
    %v930 = vsub.f32 %v702, %v636
    %v931 = vsub.f32 %v705, %v637
    %v932 = vsub.f32 %v705, %v638
    %v933 = vsub.f32 %v708, %v639
    %v934 = vsub.f32 %v708, %v640
    %v935 = vsub.f32 %v711, %v641
    %v936 = vsub.f32 %v711, %v642
    %v937 = vsub.f32 %v714, %v643
    %v938 = vsub.f32 %v714, %v644
    %v939 = vsub.f32 %v717, %v645
    %v940 = vsub.f32 %v717, %v646
    %v941 = vsub.f32 %v720, %v647
    %v942 = vsub.f32 %v720, %v648
    %v943 = vsub.f32 %v723, %v649
    %v944 = vsub.f32 %v723, %v650
    %v945 = vsub.f32 %v726, %v651
    %v946 = vsub.f32 %v726, %v652
    %v947 = vsub.f32 %v729, %v653
    %v948 = vsub.f32 %v729, %v654
    %v949 = vsub.f32 %v732, %v655
    %v950 = vsub.f32 %v732, %v656
    %v951 = vsub.f32 %v735, %v657
    %v952 = vsub.f32 %v735, %v658
    %v953 = vsub.f32 %v738, %v659
    %v954 = vsub.f32 %v738, %v660
    %v955 = vsub.f32 %v741, %v661
    %v956 = vsub.f32 %v741, %v662
    %v957 = vsub.f32 %v744, %v663
    %v958 = vsub.f32 %v744, %v664
    %v959 = vsub.f32 %v747, %v665
    %v960 = vsub.f32 %v747, %v666
    %v961 = vsub.f32 %v750, %v667
    %v962 = vsub.f32 %v750, %v668
    %v963 = vsub.f32 %v753, %v669
    %v964 = vsub.f32 %v753, %v670
    %v965 = vsub.f32 %v756, %v671
    %v966 = vsub.f32 %v756, %v672
    %v967 = vsub.f32 %v759, %v673
    %v968 = vsub.f32 %v759, %v674
    %v969 = vsub.f32 %v762, %v675
    %v970 = vsub.f32 %v762, %v676
    %v971 = vsub.f32 %v765, %v677
    %v972 = vsub.f32 %v765, %v678
    %v973 = vsub.f32 %v768, %v679
    %v974 = vsub.f32 %v768, %v680
    %v975 = vsub.f32 %v771, %v681
    %v976 = vsub.f32 %v771, %v682
    %v977 = vsub.f32 %v774, %v683
    %v978 = vsub.f32 %v774, %v684
    %v979 = vsub.f32 %v777, %v685
    %v980 = vsub.f32 %v777, %v686
    %v981 = vsub.f32 %v780, %v687
    %v982 = vsub.f32 %v780, %v688
    %v983 = vsub.f32 %v783, %v689
    %v984 = vsub.f32 %v783, %v690
    %v985 = vsub.f32 %v786, %v691
    %v986 = vsub.f32 %v786, %v692
    %v987 = vsub.f32 %v789, %v693
    %v988 = vsub.f32 %v789, %v694
    %v989 = vsub.f32 %v792, %v695
    %v990 = vsub.f32 %v792, %v696
    %v991 = vsub.f32 0.0, %v633
    %v992 = vsub.f32 0.0, %v634
    %v993 = vsub.f32 0.0, %v635
    %v994 = vsub.f32 0.0, %v636
    %v995 = vsub.f32 0.0, %v637
    %v996 = vsub.f32 0.0, %v638
    %v997 = vsub.f32 0.0, %v639
    %v998 = vsub.f32 0.0, %v640
    %v999 = vsub.f32 0.0, %v641
    %v1000 = vsub.f32 0.0, %v642
    %v1001 = vsub.f32 0.0, %v643
    %v1002 = vsub.f32 0.0, %v644
    %v1003 = vsub.f32 0.0, %v645
    %v1004 = vsub.f32 0.0, %v646
    %v1005 = vsub.f32 0.0, %v647
    %v1006 = vsub.f32 0.0, %v648
    %v1007 = vsub.f32 0.0, %v649
    %v1008 = vsub.f32 0.0, %v650
    %v1009 = vsub.f32 0.0, %v651
    %v1010 = vsub.f32 0.0, %v652
    %v1011 = vsub.f32 0.0, %v653
    %v1012 = vsub.f32 0.0, %v654
    %v1013 = vsub.f32 0.0, %v655
    %v1014 = vsub.f32 0.0, %v656
    %v1015 = vsub.f32 0.0, %v657
    %v1016 = vsub.f32 0.0, %v658
    %v1017 = vsub.f32 0.0, %v659
    %v1018 = vsub.f32 0.0, %v660
    %v1019 = vsub.f32 0.0, %v661
    %v1020 = vsub.f32 0.0, %v662
    %v1021 = vsub.f32 0.0, %v663
    %v1022 = vsub.f32 0.0, %v664
    %v1023 = vsub.f32 0.0, %v665
    %v1024 = vsub.f32 0.0, %v666
    %v1025 = vsub.f32 0.0, %v667
    %v1026 = vsub.f32 0.0, %v668
    %v1027 = vsub.f32 0.0, %v669
    %v1028 = vsub.f32 0.0, %v670
    %v1029 = vsub.f32 0.0, %v671
    %v1030 = vsub.f32 0.0, %v672
    %v1031 = vsub.f32 0.0, %v673
    %v1032 = vsub.f32 0.0, %v674
    %v1033 = vsub.f32 0.0, %v675
    %v1034 = vsub.f32 0.0, %v676
    %v1035 = vsub.f32 0.0, %v677
    %v1036 = vsub.f32 0.0, %v678
    %v1037 = vsub.f32 0.0, %v679
    %v1038 = vsub.f32 0.0, %v680
    %v1039 = vsub.f32 0.0, %v681
    %v1040 = vsub.f32 0.0, %v682
    %v1041 = vsub.f32 0.0, %v683
    %v1042 = vsub.f32 0.0, %v684
    %v1043 = vsub.f32 0.0, %v685
    %v1044 = vsub.f32 0.0, %v686
    %v1045 = vsub.f32 0.0, %v687
    %v1046 = vsub.f32 0.0, %v688
    %v1047 = vsub.f32 0.0, %v689
    %v1048 = vsub.f32 0.0, %v690
    %v1049 = vsub.f32 0.0, %v691
    %v1050 = vsub.f32 0.0, %v692
    %v1051 = vsub.f32 0.0, %v693
    %v1052 = vsub.f32 0.0, %v694
    %v1053 = vsub.f32 0.0, %v695
    %v1054 = vsub.f32 0.0, %v696
    %v1055 = vsel %vm863, %v927, %v991
    %v1056 = vsel %vm864, %v928, %v992
    %v1057 = vsel %vm865, %v929, %v993
    %v1058 = vsel %vm866, %v930, %v994
    %v1059 = vsel %vm867, %v931, %v995
    %v1060 = vsel %vm868, %v932, %v996
    %v1061 = vsel %vm869, %v933, %v997
    %v1062 = vsel %vm870, %v934, %v998
    %v1063 = vsel %vm871, %v935, %v999
    %v1064 = vsel %vm872, %v936, %v1000
    %v1065 = vsel %vm873, %v937, %v1001
    %v1066 = vsel %vm874, %v938, %v1002
    %v1067 = vsel %vm875, %v939, %v1003
    %v1068 = vsel %vm876, %v940, %v1004
    %v1069 = vsel %vm877, %v941, %v1005
    %v1070 = vsel %vm878, %v942, %v1006
    %v1071 = vsel %vm879, %v943, %v1007
    %v1072 = vsel %vm880, %v944, %v1008
    %v1073 = vsel %vm881, %v945, %v1009
    %v1074 = vsel %vm882, %v946, %v1010
    %v1075 = vsel %vm883, %v947, %v1011
    %v1076 = vsel %vm884, %v948, %v1012
    %v1077 = vsel %vm885, %v949, %v1013
    %v1078 = vsel %vm886, %v950, %v1014
    %v1079 = vsel %vm887, %v951, %v1015
    %v1080 = vsel %vm888, %v952, %v1016
    %v1081 = vsel %vm889, %v953, %v1017
    %v1082 = vsel %vm890, %v954, %v1018
    %v1083 = vsel %vm891, %v955, %v1019
    %v1084 = vsel %vm892, %v956, %v1020
    %v1085 = vsel %vm893, %v957, %v1021
    %v1086 = vsel %vm894, %v958, %v1022
    %v1087 = vsel %vm895, %v959, %v1023
    %v1088 = vsel %vm896, %v960, %v1024
    %v1089 = vsel %vm897, %v961, %v1025
    %v1090 = vsel %vm898, %v962, %v1026
    %v1091 = vsel %vm899, %v963, %v1027
    %v1092 = vsel %vm900, %v964, %v1028
    %v1093 = vsel %vm901, %v965, %v1029
    %v1094 = vsel %vm902, %v966, %v1030
    %v1095 = vsel %vm903, %v967, %v1031
    %v1096 = vsel %vm904, %v968, %v1032
    %v1097 = vsel %vm905, %v969, %v1033
    %v1098 = vsel %vm906, %v970, %v1034
    %v1099 = vsel %vm907, %v971, %v1035
    %v1100 = vsel %vm908, %v972, %v1036
    %v1101 = vsel %vm909, %v973, %v1037
    %v1102 = vsel %vm910, %v974, %v1038
    %v1103 = vsel %vm911, %v975, %v1039
    %v1104 = vsel %vm912, %v976, %v1040
    %v1105 = vsel %vm913, %v977, %v1041
    %v1106 = vsel %vm914, %v978, %v1042
    %v1107 = vsel %vm915, %v979, %v1043
    %v1108 = vsel %vm916, %v980, %v1044
    %v1109 = vsel %vm917, %v981, %v1045
    %v1110 = vsel %vm918, %v982, %v1046
    %v1111 = vsel %vm919, %v983, %v1047
    %v1112 = vsel %vm920, %v984, %v1048
    %v1113 = vsel %vm921, %v985, %v1049
    %v1114 = vsel %vm922, %v986, %v1050
    %v1115 = vsel %vm923, %v987, %v1051
    %v1116 = vsel %vm924, %v988, %v1052
    %v1117 = vsel %vm925, %v989, %v1053
    %v1118 = vsel %vm926, %v990, %v1054
    %1119 = vst [vmem:[#allocation2] sm:$0xff] %v1055
    %1120 = vst [vmem:[#allocation2 + $0x8] sm:$0xff] %v1056
    %1121 = vst [vmem:[#allocation2 + $0x10] sm:$0xff] %v1057
    %1122 = vst [vmem:[#allocation2 + $0x18] sm:$0xff] %v1058
    %1123 = vst [vmem:[#allocation2 + $0x20] sm:$0xff] %v1059
    %1124 = vst [vmem:[#allocation2 + $0x28] sm:$0xff] %v1060
    %1125 = vst [vmem:[#allocation2 + $0x30] sm:$0xff] %v1061
    %1126 = vst [vmem:[#allocation2 + $0x38] sm:$0xff] %v1062
    %1127 = vst [vmem:[#allocation2 + $0x40] sm:$0xff] %v1063
    %1128 = vst [vmem:[#allocation2 + $0x48] sm:$0xff] %v1064
    %1129 = vst [vmem:[#allocation2 + $0x50] sm:$0xff] %v1065
    %1130 = vst [vmem:[#allocation2 + $0x58] sm:$0xff] %v1066
    %1131 = vst [vmem:[#allocation2 + $0x60] sm:$0xff] %v1067
    %1132 = vst [vmem:[#allocation2 + $0x68] sm:$0xff] %v1068
    %1133 = vst [vmem:[#allocation2 + $0x70] sm:$0xff] %v1069
    %1134 = vst [vmem:[#allocation2 + $0x78] sm:$0xff] %v1070
    %1135 = vst [vmem:[#allocation2 + $0x80] sm:$0xff] %v1071
    %1136 = vst [vmem:[#allocation2 + $0x88] sm:$0xff] %v1072
    %1137 = vst [vmem:[#allocation2 + $0x90] sm:$0xff] %v1073
    %1138 = vst [vmem:[#allocation2 + $0x98] sm:$0xff] %v1074
    %1139 = vst [vmem:[#allocation2 + $0xa0] sm:$0xff] %v1075
    %1140 = vst [vmem:[#allocation2 + $0xa8] sm:$0xff] %v1076
    %1141 = vst [vmem:[#allocation2 + $0xb0] sm:$0xff] %v1077
    %1142 = vst [vmem:[#allocation2 + $0xb8] sm:$0xff] %v1078
    %1143 = vst [vmem:[#allocation2 + $0xc0] sm:$0xff] %v1079
    %1144 = vst [vmem:[#allocation2 + $0xc8] sm:$0xff] %v1080
    %1145 = vst [vmem:[#allocation2 + $0xd0] sm:$0xff] %v1081
    %1146 = vst [vmem:[#allocation2 + $0xd8] sm:$0xff] %v1082
    %1147 = vst [vmem:[#allocation2 + $0xe0] sm:$0xff] %v1083
    %1148 = vst [vmem:[#allocation2 + $0xe8] sm:$0xff] %v1084
    %1149 = vst [vmem:[#allocation2 + $0xf0] sm:$0xff] %v1085
    %1150 = vst [vmem:[#allocation2 + $0xf8] sm:$0xff] %v1086
    %1151 = vst [vmem:[#allocation2 + $0x100] sm:$0xff] %v1087
    %1152 = vst [vmem:[#allocation2 + $0x108] sm:$0xff] %v1088
    %1153 = vst [vmem:[#allocation2 + $0x110] sm:$0xff] %v1089
    %1154 = vst [vmem:[#allocation2 + $0x118] sm:$0xff] %v1090
    %1155 = vst [vmem:[#allocation2 + $0x120] sm:$0xff] %v1091
    %1156 = vst [vmem:[#allocation2 + $0x128] sm:$0xff] %v1092
    %1157 = vst [vmem:[#allocation2 + $0x130] sm:$0xff] %v1093
    %1158 = vst [vmem:[#allocation2 + $0x138] sm:$0xff] %v1094
    %1159 = vst [vmem:[#allocation2 + $0x140] sm:$0xff] %v1095
    %1160 = vst [vmem:[#allocation2 + $0x148] sm:$0xff] %v1096
    %1161 = vst [vmem:[#allocation2 + $0x150] sm:$0xff] %v1097
    %1162 = vst [vmem:[#allocation2 + $0x158] sm:$0xff] %v1098
    %1163 = vst [vmem:[#allocation2 + $0x160] sm:$0xff] %v1099
    %1164 = vst [vmem:[#allocation2 + $0x168] sm:$0xff] %v1100
    %1165 = vst [vmem:[#allocation2 + $0x170] sm:$0xff] %v1101
    %1166 = vst [vmem:[#allocation2 + $0x178] sm:$0xff] %v1102
    %1167 = vst [vmem:[#allocation2 + $0x180] sm:$0xff] %v1103
    %1168 = vst [vmem:[#allocation2 + $0x188] sm:$0xff] %v1104
    %1169 = vst [vmem:[#allocation2 + $0x190] sm:$0xff] %v1105
    %1170 = vst [vmem:[#allocation2 + $0x198] sm:$0xff] %v1106
    %1171 = vst [vmem:[#allocation2 + $0x1a0] sm:$0xff] %v1107
    %1172 = vst [vmem:[#allocation2 + $0x1a8] sm:$0xff] %v1108
    %1173 = vst [vmem:[#allocation2 + $0x1b0] sm:$0xff] %v1109
    %1174 = vst [vmem:[#allocation2 + $0x1b8] sm:$0xff] %v1110
    %1175 = vst [vmem:[#allocation2 + $0x1c0] sm:$0xff] %v1111
    %1176 = vst [vmem:[#allocation2 + $0x1c8] sm:$0xff] %v1112
    %1177 = vst [vmem:[#allocation2 + $0x1d0] sm:$0xff] %v1113
    %1178 = vst [vmem:[#allocation2 + $0x1d8] sm:$0xff] %v1114
    %1179 = vst [vmem:[#allocation2 + $0x1e0] sm:$0xff] %v1115
    %1180 = vst [vmem:[#allocation2 + $0x1e8] sm:$0xff] %v1116
    %1181 = vst [vmem:[#allocation2 + $0x1f0] sm:$0xff] %v1117
    %1182 = vst [vmem:[#allocation2 + $0x1f8] sm:$0xff] %v1118
    // Predicated region
    $region14: #{tpu_custom_call.1} parent=1 // pred_check
      _
    $region15: #{tpu_custom_call.1} parent=1 // pred_check_branch
      %1184 = sbr.rel (0) target = $region17
    $region16: #{tpu_custom_call.1} parent=1 // pred_region
      %s1186 = ssub.s32 8192, 8192
      %1187 = vsyncadd [#allocation3], %s1186
      %s1188 = sshll.u32 [#allocation2], 4
      %s1189 = int_to_ptr.vmem [resolvable:$true] %s1188
      %1194 = dma.vmem_to_hbm [thread:$0]  %s1189, 8192, %s3, [#allocation3], 256, 256, 16
    $region17: #{tpu_custom_call.1} parent=1 // pred_fallthru
      _
    // Predicated region
    $region18: #{tpu_custom_call.1} parent=1 // pred_check
      _
    $region19: #{tpu_custom_call.1} parent=1 // pred_check_branch
      %1196 = sbr.rel (0) target = $region21
    $region20: #{tpu_custom_call.1} parent=1 // pred_region
      %1197 = dma.done [#allocation3], 8192
    $region21: #{tpu_custom_call.1} parent=1 // pred_fallthru
      _
    %1198 = vsyncpa [#allocation3], 1

</llo_original>
